<compile_context>
chip_gen: v5e
topology: v5e:2x2
jax: 0.10.0
libtpu: 0.0.40
codegen_flags: <defaults>
</compile_context>

<pallas_src>
import jax
import jax.numpy as jnp
from jax.experimental import pallas as pl
from jax.experimental.pallas import tpu as pltpu


def _round_up(x, m):
    return ((x + m - 1) // m) * m


def _cdiv(a, b):
    return (a + b - 1) // b


def _choose_tm(M, tm_max):
    """Pick the M tile: large (amortize per-step overhead), multiple of 16
    (bf16 sublane packing); when cheap, prefer an even grid of >= 2 blocks so
    both of v7x's TensorCores stay busy."""
    tm = max(16, min(_round_up(tm_max, 16), _round_up(M, 16)))
    for cand in (tm, tm // 2, tm // 4):
        if cand < 256 or cand % 16:
            break
        g = _cdiv(M, cand)
        if g >= 2 and g % 2 == 0:
            return cand
        if _cdiv(M, tm) > 8:
            # Large, slightly-odd grid: ~1/grid imbalance is cheaper than
            # halving the tile (which adds per-step overhead).
            break
    return tm


def _patch_embed_kernel(p_ref, w_ref, b_ref, o_ref):
    # One MXU matmul per M tile; weight and bias are VMEM-resident across the
    # whole grid (constant index_map). f32 accumulate, f32 bias, cast once.
    acc = jnp.dot(p_ref[...], w_ref[...], preferred_element_type=jnp.float32)
    o_ref[...] = (acc + b_ref[...]).astype(o_ref.dtype)


def patch_embed_forward(x, weight, bias, tubelet_size, patch_size, *,
                        tm=512, compute_dtype=jnp.bfloat16, out_dtype=None):
    """x: (B, C, T, H, W); weight: (E, C, kt, ph, pw); bias: (E,) -> (B, N, E).

    Matches nn.Conv3d(kernel == stride) -> flatten(2).transpose(1, 2).
    bf16 MXU inputs / f32 accumulation; output dtype defaults to bf16.
    """
    B, C, T, H, W = x.shape
    E = weight.shape[0]
    kt, ph, pw = int(tubelet_size), int(patch_size[0]), int(patch_size[1])
    Tp, Hp, Wp = T // kt, H // ph, W // pw
    N = Tp * Hp * Wp
    K = C * kt * ph * pw
    M = B * N
    out_dtype = compute_dtype if out_dtype is None else out_dtype

    # --- patch extraction (pure layout, no compute). Cast to the bf16 compute
    # dtype *before* the transpose so the materialized patch copy is half-size;
    # under jit the astype + reshape + transpose + pad chain fuses into a
    # single pass that writes the (Mp, Kp) buffer once.
    xc = x.astype(compute_dtype)
    patches = xc.reshape(B, C, Tp, kt, Hp, ph, Wp, pw)
    patches = patches.transpose(0, 2, 4, 6, 1, 3, 5, 7)  # (B,Tp,Hp,Wp,C,kt,ph,pw)
    patches = patches.reshape(M, K)

    # Conv3d weight (E, C, kt, ph, pw) -> (K, E). Bias stays f32 (added to the
    # f32 accumulator before the final cast).
    w_mat = weight.reshape(E, K).T.astype(compute_dtype)
    b_mat = bias.astype(jnp.float32).reshape(1, E)

    # --- padding: lane-dense K / E (multiples of 128), M to the tile size.
    # Zero padding is numerically exact; for common production shapes all pads
    # (and the final slice) are no-ops.
    Kp = _round_up(K, 128)
    Ep = _round_up(E, 128)
    tm = _choose_tm(M, tm)
    Mp = _round_up(M, tm)

    if (Mp, Kp) != (M, K):
        patches = jnp.pad(patches, ((0, Mp - M), (0, Kp - K)))
    if (Kp, Ep) != (K, E):
        w_mat = jnp.pad(w_mat, ((0, Kp - K), (0, Ep - E)))
    if Ep != E:
        b_mat = jnp.pad(b_mat, ((0, 0), (0, Ep - E)))

    # VMEM working set (default double-buffered tiles). Only raise the scoped
    # limit when a caller-selected tile actually needs it.
    in_sz = jnp.dtype(compute_dtype).itemsize
    out_sz = jnp.dtype(out_dtype).itemsize
    vmem_est = 2 * (tm * Kp * in_sz + Kp * Ep * in_sz + tm * Ep * out_sz) \
        + 2 * Ep * 4
    cp_kwargs = dict(dimension_semantics=("parallel",))
    if vmem_est > (24 << 20):
        cp_kwargs["vmem_limit_bytes"] = int(vmem_est + (8 << 20))

    cost = pl.CostEstimate(
        flops=2 * M * K * E,
        transcendentals=0,
        bytes_accessed=(Mp * Kp + Kp * Ep) * in_sz + Ep * 4 + Mp * Ep * out_sz,
    )

    out = pl.pallas_call(
        _patch_embed_kernel,
        out_shape=jax.ShapeDtypeStruct((Mp, Ep), out_dtype),
        grid_spec=pltpu.PrefetchScalarGridSpec(
            num_scalar_prefetch=0,
            grid=(Mp // tm,),
            in_specs=[
                pl.BlockSpec((tm, Kp), lambda m: (m, 0)),   # patch tile (streamed)
                pl.BlockSpec((Kp, Ep), lambda m: (0, 0)),   # weight (resident)
                pl.BlockSpec((1, Ep), lambda m: (0, 0)),    # bias (resident)
            ],
            out_specs=pl.BlockSpec((tm, Ep), lambda m: (m, 0)),
        ),
        compiler_params=pltpu.CompilerParams(**cp_kwargs),
        cost_estimate=cost,
    )(patches, w_mat, b_mat)

    if (Mp, Ep) != (M, E):
        out = out[:M, :E]
    return out.reshape(B, N, E)


if __name__ == "__main__":
    # Small config consistent with the module.
    B, C = 2, 4
    T, H, W = 4, 16, 16
    tubelet_size = 2
    patch_size = (8, 8)
    embed_dim = 32

    key = jax.random.PRNGKey(0)
    kx, kw, kb = jax.random.split(key, 3)

    x = jax.random.normal(kx, (B, C, T, H, W), dtype=jnp.float32)
    # Deterministic synthetic parameters (Conv3d shapes from __init__).
    fan_in = C * tubelet_size * patch_size[0] * patch_size[1]
    weight = jax.random.normal(
        kw, (embed_dim, C, tubelet_size, patch_size[0], patch_size[1]),
        dtype=jnp.float32,
    ) * (1.0 / jnp.sqrt(fan_in))
    bias = jax.random.normal(kb, (embed_dim,), dtype=jnp.float32) * 0.01

    fwd = jax.jit(patch_embed_forward, static_argnums=(3, 4))
    out = jax.block_until_ready(fwd(x, weight, bias, tubelet_size, patch_size))

    # Reference: Conv3d (stride == kernel) on bf16-rounded inputs (matching the
    # kernel's bf16 MXU inputs / f32 accumulation), then
    # flatten(2).transpose(1, 2). Kernel output is bf16 by design.
    x_q = x.astype(jnp.bfloat16).astype(jnp.float32)
    w_q = weight.astype(jnp.bfloat16).astype(jnp.float32)
    ref = jax.lax.conv_general_dilated(
        x_q, w_q,
        window_strides=(tubelet_size, patch_size[0], patch_size[1]),
        padding="VALID",
        dimension_numbers=("NCTHW", "OITHW", "NCTHW"),
    ) + bias.reshape(1, embed_dim, 1, 1, 1)
    ref = ref.reshape(B, embed_dim, -1).transpose(0, 2, 1)

    out_f32 = out.astype(jnp.float32)
    assert out.shape == ref.shape, (out.shape, ref.shape)
    assert out.dtype == jnp.bfloat16, out.dtype
    assert jnp.allclose(out_f32, ref, atol=3e-2, rtol=3e-2), float(
        jnp.max(jnp.abs(out_f32 - ref)))
    print("KERNEL_OK")
</pallas_src>

<mosaic_0001>
module attributes {stable_mosaic.version = 11 : i64} {
  func.func @_patch_embed_kernel(%arg0: i32, %arg1: memref<16x512xbf16, #tpu.memory_space<vmem>>, %arg2: memref<512x128xbf16, #tpu.memory_space<vmem>>, %arg3: memref<1x128xf32, #tpu.memory_space<vmem>>, %arg4: memref<16x128xbf16, #tpu.memory_space<vmem>>) attributes {dimension_semantics = [#tpu.dimension_semantics<parallel>], iteration_bounds = array<i64: 1>, scalar_prefetch = 0 : i64, scratch_operands = 0 : i64, tpu.core_type = #tpu.core_type<tc>, window_params = [{transform_indices = @transform_0, window_bounds = array<i64: 16, 512>}, {pipeline_mode = #tpu.pipeline_mode<synchronous>, transform_indices = @transform_1, window_bounds = array<i64: 512, 128>}, {pipeline_mode = #tpu.pipeline_mode<synchronous>, transform_indices = @transform_2, window_bounds = array<i64: 1, 128>}, {transform_indices = @transform_3, window_bounds = array<i64: 16, 128>}]} {
    %c0 = arith.constant 0 : index
    %c0_0 = arith.constant 0 : index
    %0 = vector.load %arg1[%c0, %c0_0] : memref<16x512xbf16, #tpu.memory_space<vmem>>, vector<16x512xbf16>
    %c0_1 = arith.constant 0 : index
    %c0_2 = arith.constant 0 : index
    %1 = vector.load %arg2[%c0_1, %c0_2] : memref<512x128xbf16, #tpu.memory_space<vmem>>, vector<512x128xbf16>
    %cst = arith.constant dense<0.000000e+00> : vector<16x128xf32>
    %2 = tpu.matmul %0, %1, %cst {dimension_numbers = #tpu.dot_dimension_numbers<[1], [0], [0], [1], [0, 0, 1, 1], [], []>} : vector<16x512xbf16>, vector<512x128xbf16>, vector<16x128xf32> -> vector<16x128xf32>
    %c0_3 = arith.constant 0 : index
    %c0_4 = arith.constant 0 : index
    %3 = vector.load %arg3[%c0_3, %c0_4] : memref<1x128xf32, #tpu.memory_space<vmem>>, vector<1x128xf32>
    %4 = vector.broadcast %3 : vector<1x128xf32> to vector<16x128xf32>
    %5 = arith.addf %2, %4 : vector<16x128xf32>
    %6 = arith.truncf %5 : vector<16x128xf32> to vector<16x128xbf16>
    %c0_5 = arith.constant 0 : index
    %c0_6 = arith.constant 0 : index
    %7 = vector.load %arg4[%c0_5, %c0_6] : memref<16x128xbf16, #tpu.memory_space<vmem>>, vector<16x128xbf16>
    tpu.vector_store %arg4[%c0_5, %c0_6], %6 {strides = array<i32>} : memref<16x128xbf16, #tpu.memory_space<vmem>>, vector<16x128xbf16>,
    return
  }
  func.func @transform_0(%arg0: i32) -> (i32, i32) {
    %c0_i32 = arith.constant 0 : i32
    %c0_i32_0 = arith.constant 0 : i32
    return %arg0, %c0_i32 : i32, i32
  }
  func.func @transform_1(%arg0: i32) -> (i32, i32) {
    %c0_i32 = arith.constant 0 : i32
    %c0_i32_0 = arith.constant 0 : i32
    %c0_i32_1 = arith.constant 0 : i32
    return %c0_i32, %c0_i32_0 : i32, i32
  }
  func.func @transform_2(%arg0: i32) -> (i32, i32) {
    %c0_i32 = arith.constant 0 : i32
    %c0_i32_0 = arith.constant 0 : i32
    %c0_i32_1 = arith.constant 0 : i32
    return %c0_i32, %c0_i32_0 : i32, i32
  }
  func.func @transform_3(%arg0: i32) -> (i32, i32) {
    %c0_i32 = arith.constant 0 : i32
    %c0_i32_0 = arith.constant 0 : i32
    return %arg0, %c0_i32 : i32, i32
  }
}

</mosaic_0001>

<llo_original>
// kernel: patch_embed_forward.1
$region0: #{patch_embed_forward.1}
  #allocation0 [shape = 'u32[]', space=smem, size = 0x4, offset = 0x4, fixed_abs, tag = 'smem constant byte address 0x4 - core index']
  #allocation1 [shape = 'u32[72,128]{1,0:T(1,128)}', space=vmem, size = 0x9000, scoped, tag = 'internal scratch']
  %s0 = inlined_call_operand.vmem [shape: bf16[16,512], index: 0, kind: input, shape index: {}]
  %s1 = inlined_call_operand.vmem [shape: bf16[512,128], index: 1, kind: input, shape index: {}]
  %s2 = inlined_call_operand.vmem [shape: f32[1,128], index: 2, kind: input, shape index: {}]
  %s3 = inlined_call_operand.vmem [shape: bf16[16,128], index: 3, kind: output, shape index: {}]
  %s4 = sld [smem:[#allocation0]]
  $region22: #{patch_embed_forward.1} parent=0
    _
  %s6 = ssub.s32 1, %s4
  %s7 = scalar_select 0, %s6, %s4
  // Predicated region
  $region2: #{patch_embed_forward.1} parent=0 // pred_check
    _
  $region3: #{patch_embed_forward.1} parent=0 // pred_check_branch
    %9 = sbr.rel (0) target = $region5
  $region4: #{patch_embed_forward.1} parent=0 // pred_region
    _
  $region5: #{patch_embed_forward.1} parent=0 // pred_fallthru
    _
  // Predicated region
  $region6: #{patch_embed_forward.1} parent=0 // pred_check
    _
  $region7: #{patch_embed_forward.1} parent=0 // pred_check_branch
    %11 = sbr.rel (0) target = $region9
  $region8: #{patch_embed_forward.1} parent=0 // pred_region
    _
  $region9: #{patch_embed_forward.1} parent=0 // pred_fallthru
    _
  // Predicated region
  $region10: #{patch_embed_forward.1} parent=0 // pred_check
    _
  $region11: #{patch_embed_forward.1} parent=0 // pred_check_branch
    %13 = sbr.rel (0) target = $region13
  $region12: #{patch_embed_forward.1} parent=0 // pred_region
    _
  $region13: #{patch_embed_forward.1} parent=0 // pred_fallthru
    _
  %v14 = vld [vmem:[%s0] sm:$0xff]
  %v15 = vld [vmem:[%s0 + $0x8] sm:$0xff]
  %v16 = vld [vmem:[%s0 + $0x10] sm:$0xff]
  %v17 = vld [vmem:[%s0 + $0x18] sm:$0xff]
  %v18 = vld [vmem:[%s1] sm:$0xf]
  %v19 = vld [vmem:[%s1 + $0x4] sm:$0xf]
  %v20 = vld [vmem:[%s1 + $0x8] sm:$0xf]
  %v21 = vld [vmem:[%s1 + $0xc] sm:$0xf]
  %v22 = vld [vmem:[%s1 + $0x10] sm:$0xf]
  %v23 = vld [vmem:[%s1 + $0x14] sm:$0xf]
  %v24 = vld [vmem:[%s1 + $0x18] sm:$0xf]
  %v25 = vld [vmem:[%s1 + $0x1c] sm:$0xf]
  %v26 = vld [vmem:[%s1 + $0x20] sm:$0xf]
  %v27 = vld [vmem:[%s1 + $0x24] sm:$0xf]
  %v28 = vld [vmem:[%s1 + $0x28] sm:$0xf]
  %v29 = vld [vmem:[%s1 + $0x2c] sm:$0xf]
  %v30 = vld [vmem:[%s1 + $0x30] sm:$0xf]
  %v31 = vld [vmem:[%s1 + $0x34] sm:$0xf]
  %v32 = vld [vmem:[%s1 + $0x38] sm:$0xf]
  %v33 = vld [vmem:[%s1 + $0x3c] sm:$0xf]
  %v34 = vld [vmem:[%s1 + $0x40] sm:$0xf]
  %v35 = vld [vmem:[%s1 + $0x44] sm:$0xf]
  %v36 = vld [vmem:[%s1 + $0x48] sm:$0xf]
  %v37 = vld [vmem:[%s1 + $0x4c] sm:$0xf]
  %v38 = vld [vmem:[%s1 + $0x50] sm:$0xf]
  %v39 = vld [vmem:[%s1 + $0x54] sm:$0xf]
  %v40 = vld [vmem:[%s1 + $0x58] sm:$0xf]
  %v41 = vld [vmem:[%s1 + $0x5c] sm:$0xf]
  %v42 = vld [vmem:[%s1 + $0x60] sm:$0xf]
  %v43 = vld [vmem:[%s1 + $0x64] sm:$0xf]
  %v44 = vld [vmem:[%s1 + $0x68] sm:$0xf]
  %v45 = vld [vmem:[%s1 + $0x6c] sm:$0xf]
  %v46 = vld [vmem:[%s1 + $0x70] sm:$0xf]
  %v47 = vld [vmem:[%s1 + $0x74] sm:$0xf]
  %v48 = vld [vmem:[%s1 + $0x78] sm:$0xf]
  %v49 = vld [vmem:[%s1 + $0x7c] sm:$0xf]
  %v50 = vld [vmem:[%s1 + $0x80] sm:$0xf]
  %v51 = vld [vmem:[%s1 + $0x84] sm:$0xf]
  %v52 = vld [vmem:[%s1 + $0x88] sm:$0xf]
  %v53 = vld [vmem:[%s1 + $0x8c] sm:$0xf]
  %v54 = vld [vmem:[%s1 + $0x90] sm:$0xf]
  %v55 = vld [vmem:[%s1 + $0x94] sm:$0xf]
  %v56 = vld [vmem:[%s1 + $0x98] sm:$0xf]
  %v57 = vld [vmem:[%s1 + $0x9c] sm:$0xf]
  %v58 = vld [vmem:[%s1 + $0xa0] sm:$0xf]
  %v59 = vld [vmem:[%s1 + $0xa4] sm:$0xf]
  %v60 = vld [vmem:[%s1 + $0xa8] sm:$0xf]
  %v61 = vld [vmem:[%s1 + $0xac] sm:$0xf]
  %v62 = vld [vmem:[%s1 + $0xb0] sm:$0xf]
  %v63 = vld [vmem:[%s1 + $0xb4] sm:$0xf]
  %v64 = vld [vmem:[%s1 + $0xb8] sm:$0xf]
  %v65 = vld [vmem:[%s1 + $0xbc] sm:$0xf]
  %v66 = vld [vmem:[%s1 + $0xc0] sm:$0xf]
  %v67 = vld [vmem:[%s1 + $0xc4] sm:$0xf]
  %v68 = vld [vmem:[%s1 + $0xc8] sm:$0xf]
  %v69 = vld [vmem:[%s1 + $0xcc] sm:$0xf]
  %v70 = vld [vmem:[%s1 + $0xd0] sm:$0xf]
  %v71 = vld [vmem:[%s1 + $0xd4] sm:$0xf]
  %v72 = vld [vmem:[%s1 + $0xd8] sm:$0xf]
  %v73 = vld [vmem:[%s1 + $0xdc] sm:$0xf]
  %v74 = vld [vmem:[%s1 + $0xe0] sm:$0xf]
  %v75 = vld [vmem:[%s1 + $0xe4] sm:$0xf]
  %v76 = vld [vmem:[%s1 + $0xe8] sm:$0xf]
  %v77 = vld [vmem:[%s1 + $0xec] sm:$0xf]
  %v78 = vld [vmem:[%s1 + $0xf0] sm:$0xf]
  %v79 = vld [vmem:[%s1 + $0xf4] sm:$0xf]
  %v80 = vld [vmem:[%s1 + $0xf8] sm:$0xf]
  %v81 = vld [vmem:[%s1 + $0xfc] sm:$0xf]
  %v82 = vld [vmem:[%s2] sm:$0x1]
  %v84 = vperm.slane %v82, 0
  %v90 = vunpack.c.l.b16 %v14
  %v91 = vunpack.c.h.b16 %v14
  %v92 = vunpack.c.l.b16 %v15
  %v93 = vunpack.c.h.b16 %v15
  %v94 = vunpack.c.l.b16 %v16
  %v95 = vunpack.c.h.b16 %v16
  %v96 = vunpack.c.l.b16 %v17
  %v97 = vunpack.c.h.b16 %v17
  %v98 = vpack.c.b16 %v94, %v90
  %v99 = vpack.c.b16 %v95, %v91
  %v100 = vpack.c.b16 %v96, %v92
  %v101 = vpack.c.b16 %v97, %v93
  %v170 = vunpack.c.l.b16 %v18
  %v171 = vunpack.c.l.b16 %v19
  %v172 = vunpack.c.l.b16 %v20
  %v173 = vunpack.c.l.b16 %v21
  %v174 = vunpack.c.l.b16 %v22
  %v175 = vunpack.c.l.b16 %v23
  %v176 = vunpack.c.l.b16 %v24
  %v177 = vunpack.c.l.b16 %v25
  %v178 = vunpack.c.l.b16 %v26
  %v179 = vunpack.c.l.b16 %v27
  %v180 = vunpack.c.l.b16 %v28
  %v181 = vunpack.c.l.b16 %v29
  %v182 = vunpack.c.l.b16 %v30
  %v183 = vunpack.c.l.b16 %v31
  %v184 = vunpack.c.l.b16 %v32
  %v185 = vunpack.c.l.b16 %v33
  %v186 = vunpack.c.l.b16 %v34
  %v187 = vunpack.c.l.b16 %v35
  %v188 = vunpack.c.l.b16 %v36
  %v189 = vunpack.c.l.b16 %v37
  %v190 = vunpack.c.l.b16 %v38
  %v191 = vunpack.c.l.b16 %v39
  %v192 = vunpack.c.l.b16 %v40
  %v193 = vunpack.c.l.b16 %v41
  %v194 = vunpack.c.l.b16 %v42
  %v195 = vunpack.c.l.b16 %v43
  %v196 = vunpack.c.l.b16 %v44
  %v197 = vunpack.c.l.b16 %v45
  %v198 = vunpack.c.l.b16 %v46
  %v199 = vunpack.c.l.b16 %v47
  %v200 = vunpack.c.l.b16 %v48
  %v201 = vunpack.c.l.b16 %v49
  %v202 = vunpack.c.l.b16 %v50
  %v203 = vunpack.c.l.b16 %v51
  %v204 = vunpack.c.l.b16 %v52
  %v205 = vunpack.c.l.b16 %v53
  %v206 = vunpack.c.l.b16 %v54
  %v207 = vunpack.c.l.b16 %v55
  %v208 = vunpack.c.l.b16 %v56
  %v209 = vunpack.c.l.b16 %v57
  %v210 = vunpack.c.l.b16 %v58
  %v211 = vunpack.c.l.b16 %v59
  %v212 = vunpack.c.l.b16 %v60
  %v213 = vunpack.c.l.b16 %v61
  %v214 = vunpack.c.l.b16 %v62
  %v215 = vunpack.c.l.b16 %v63
  %v216 = vunpack.c.l.b16 %v64
  %v217 = vunpack.c.l.b16 %v65
  %v218 = vunpack.c.l.b16 %v66
  %v219 = vunpack.c.l.b16 %v67
  %v220 = vunpack.c.l.b16 %v68
  %v221 = vunpack.c.l.b16 %v69
  %v222 = vunpack.c.l.b16 %v70
  %v223 = vunpack.c.l.b16 %v71
  %v224 = vunpack.c.l.b16 %v72
  %v225 = vunpack.c.l.b16 %v73
  %v226 = vunpack.c.l.b16 %v74
  %v227 = vunpack.c.l.b16 %v75
  %v228 = vunpack.c.l.b16 %v76
  %v229 = vunpack.c.l.b16 %v77
  %v230 = vunpack.c.l.b16 %v78
  %v231 = vunpack.c.l.b16 %v79
  %v232 = vunpack.c.l.b16 %v80
  %v233 = vunpack.c.l.b16 %v81
  %v234 = vpack.c.b16 %v171, %v170
  %v235 = vpack.c.b16 %v173, %v172
  %v236 = vpack.c.b16 %v175, %v174
  %v237 = vpack.c.b16 %v177, %v176
  %v238 = vpack.c.b16 %v179, %v178
  %v239 = vpack.c.b16 %v181, %v180
  %v240 = vpack.c.b16 %v183, %v182
  %v241 = vpack.c.b16 %v185, %v184
  %v242 = vpack.c.b16 %v187, %v186
  %v243 = vpack.c.b16 %v189, %v188
  %v244 = vpack.c.b16 %v191, %v190
  %v245 = vpack.c.b16 %v193, %v192
  %v246 = vpack.c.b16 %v195, %v194
  %v247 = vpack.c.b16 %v197, %v196
  %v248 = vpack.c.b16 %v199, %v198
  %v249 = vpack.c.b16 %v201, %v200
  %v250 = vpack.c.b16 %v203, %v202
  %v251 = vpack.c.b16 %v205, %v204
  %v252 = vpack.c.b16 %v207, %v206
  %v253 = vpack.c.b16 %v209, %v208
  %v254 = vpack.c.b16 %v211, %v210
  %v255 = vpack.c.b16 %v213, %v212
  %v256 = vpack.c.b16 %v215, %v214
  %v257 = vpack.c.b16 %v217, %v216
  %v258 = vpack.c.b16 %v219, %v218
  %v259 = vpack.c.b16 %v221, %v220
  %v260 = vpack.c.b16 %v223, %v222
  %v261 = vpack.c.b16 %v225, %v224
  %v262 = vpack.c.b16 %v227, %v226
  %v263 = vpack.c.b16 %v229, %v228
  %v264 = vpack.c.b16 %v231, %v230
  %v265 = vpack.c.b16 %v233, %v232
  %298 = vmatpush.bf16.msra.mxu0 %v241
  %299 = vmatpush.bf16.msra.mxu0 %v240
  %300 = vmatpush.bf16.msra.mxu0 %v239
  %301 = vmatpush.bf16.msra.mxu0 %v238
  %302 = vmatpush.bf16.msra.mxu0 %v237
  %303 = vmatpush.bf16.msra.mxu0 %v236
  %304 = vmatpush.bf16.msra.mxu0 %v235
  %305 = vmatpush.bf16.msra.mxu0 %v234
  %306 = vmatmul.bf16.gmra.mxu0 %v98
  %v307 = vpop.f32.mrf.mxu0
  %v308 = vadd.f32 %v84, %v307
  %v309 = vpop.f32.mrf.mxu0
  %v310 = vadd.f32 %v84, %v309
  %311 = vdwg.mxu0
  %312 = vmatpush.bf16.msra.mxu0 %v249
  %313 = vmatpush.bf16.msra.mxu0 %v248
  %314 = vmatpush.bf16.msra.mxu0 %v247
  %315 = vmatpush.bf16.msra.mxu0 %v246
  %316 = vmatpush.bf16.msra.mxu0 %v245
  %317 = vmatpush.bf16.msra.mxu0 %v244
  %318 = vmatpush.bf16.msra.mxu0 %v243
  %319 = vmatpush.bf16.msra.mxu0 %v242
  %320 = vmatmul.bf16.gmra.mxu0 %v99
  %v321 = vpop.f32.mrf.mxu0
  %v322 = vadd.f32 %v308, %v321
  %v323 = vpop.f32.mrf.mxu0
  %v324 = vadd.f32 %v310, %v323
  %325 = vdwg.mxu0
  %326 = vmatpush.bf16.msra.mxu0 %v257
  %327 = vmatpush.bf16.msra.mxu0 %v256
  %328 = vmatpush.bf16.msra.mxu0 %v255
  %329 = vmatpush.bf16.msra.mxu0 %v254
  %330 = vmatpush.bf16.msra.mxu0 %v253
  %331 = vmatpush.bf16.msra.mxu0 %v252
  %332 = vmatpush.bf16.msra.mxu0 %v251
  %333 = vmatpush.bf16.msra.mxu0 %v250
  %334 = vmatmul.bf16.gmra.mxu0 %v100
  %v335 = vpop.f32.mrf.mxu0
  %v336 = vadd.f32 %v322, %v335
  %v337 = vpop.f32.mrf.mxu0
  %v338 = vadd.f32 %v324, %v337
  %339 = vdwg.mxu0
  %340 = vmatpush.bf16.msra.mxu0 %v265
  %341 = vmatpush.bf16.msra.mxu0 %v264
  %342 = vmatpush.bf16.msra.mxu0 %v263
  %343 = vmatpush.bf16.msra.mxu0 %v262
  %344 = vmatpush.bf16.msra.mxu0 %v261
  %345 = vmatpush.bf16.msra.mxu0 %v260
  %346 = vmatpush.bf16.msra.mxu0 %v259
  %347 = vmatpush.bf16.msra.mxu0 %v258
  %348 = vmatmul.bf16.gmra.mxu0 %v101
  %v349 = vpop.f32.mrf.mxu0
  %v350 = vadd.f32 %v336, %v349
  %v351 = vpop.f32.mrf.mxu0
  %v352 = vadd.f32 %v338, %v351
  %353 = vdwg.mxu0
  %v354 = vpack.c.bf16 %v350, %v350
  %v355 = vpack.c.bf16 %v352, %v352
  %356 = vst [vmem:[%s3] sm:$0xf] %v354
  %357 = vst [vmem:[%s3 + $0x4] sm:$0xf] %v355
  // Predicated region
  $region14: #{patch_embed_forward.1} parent=0 // pred_check
    _
  $region15: #{patch_embed_forward.1} parent=0 // pred_check_branch
    %359 = sbr.rel (0) target = $region17
  $region16: #{patch_embed_forward.1} parent=0 // pred_region
    _
  $region17: #{patch_embed_forward.1} parent=0 // pred_fallthru
    _
  // Predicated region
  $region18: #{patch_embed_forward.1} parent=0 // pred_check
    _
  $region19: #{patch_embed_forward.1} parent=0 // pred_check_branch
    %361 = sbr.rel (0) target = $region21
  $region20: #{patch_embed_forward.1} parent=0 // pred_region
    _
  $region21: #{patch_embed_forward.1} parent=0 // pred_fallthru
    _

</llo_original>
